<compile_context>
chip_gen: v6e
topology: v6e:2x2x1
jax: 0.10.0
libtpu: 0.0.40
codegen_flags: <defaults>
</compile_context>

<pallas_src>
import functools

import jax
import jax.numpy as jnp
import numpy as np
from jax.experimental import pallas as pl
from jax.experimental.pallas import tpu as pltpu

# primes from the reference hash(); 2654435761 wrapped to int32 (two's complement) — the final
# `& ((1<<log2T)-1)` mask makes low-bit / wrapping arithmetic equivalent to the torch semantics.
_PRIME1 = -1640531535          # int32 view of 2654435761
_PRIME2 = 805459861


def _hashenc_kernel(g_ref, mw_ref, out_ref):
    """One grid step = (one hash level, one point tile).

    g_ref  : VMEM (8, PT, 128) — gathered packed feature rows, corner-major; lane 2k holds
             feature-0 of packed column k, lane 2k+1 holds feature-1.
    mw_ref : VMEM (8, PT, 128) — per-corner lane-mask * trilinear corner weight (nonzero only
             on the two lanes belonging to that corner's hash entry).
    out_ref: VMEM (PT, 128)    — weighted sum over the 8 voxel corners (lane-dense).
    """
    acc = g_ref[0] * mw_ref[0]
    for c in range(1, 8):                       # 8 voxel corners, statically unrolled, pure VPU
        acc = acc + g_ref[c] * mw_ref[c]
    out_ref[...] = acc


def _pick_point_tile(bp):
    """Largest tile (multiple of 8 sublanes) that evenly divides the padded batch."""
    for t in (512, 256, 128, 64, 32, 16, 8):
        if bp % t == 0:
            return t
    return bp


@functools.partial(jax.jit, static_argnames=("n_levels", "n_features_per_level",
                                              "log2_hashmap_size", "base_resolution",
                                              "finest_resolution"))
def hash_encoding_forward(points, bounding_box, emb_table, *, n_levels=16,
                          n_features_per_level=2, log2_hashmap_size=19,
                          base_resolution=16, finest_resolution=512):
    """points: (B,3) f32; bounding_box: (2,3) f32; emb_table: (L, 2**log2T, 2) f32."""
    assert n_features_per_level == 2, "trilinear_interp in the reference assumes 2 features/level"
    B = points.shape[0]
    L = n_levels
    T = 1 << log2_hashmap_size
    assert T % 64 == 0
    R = T // 64                                     # packed 128-lane rows per level

    points = points.astype(jnp.float32)
    bounding_box = bounding_box.astype(jnp.float32)

    # pad the point batch to a sublane multiple; padded points produce rows we simply discard.
    Bp = (B + 7) // 8 * 8
    pts = jnp.pad(points, ((0, Bp - B), (0, 0)))
    PT = _pick_point_tile(Bp)
    n_pt = Bp // PT

    # per-level resolutions / voxel sizes (same formula as the torch __init__ / getvoxelembedding)
    growth = jnp.exp((jnp.log(jnp.float32(finest_resolution)) -
                      jnp.log(jnp.float32(base_resolution))) / (n_levels - 1))
    res = jnp.floor(jnp.float32(base_resolution) *
                    growth ** jnp.arange(L, dtype=jnp.float32))                        # (L,)
    step = (bounding_box[1] - bounding_box[0])[None, :] / res[:, None]                 # (L, 3)
    off = bounding_box[0][None, None, :]                                               # (1, 1, 3)

    # --- vectorized precompute (cheap XLA): corner hashes + trilinear corner weights ----------
    lb_f = jnp.floor((pts[None, :, :] - off) / step[:, None, :])                       # (L, Bp, 3)
    lb = lb_f.astype(jnp.int32)
    pi = jnp.array([[0, 0, 0], [0, 0, 1], [0, 1, 0], [0, 1, 1],
                    [1, 0, 0], [1, 0, 1], [1, 1, 0], [1, 1, 1]], jnp.int32)            # (8, 3)
    pind = lb[:, :, None, :] + pi[None, None, :, :]                                    # (L, Bp, 8, 3)
    h = (pind[..., 0]
         ^ (pind[..., 1] * jnp.int32(_PRIME1))
         ^ (pind[..., 2] * jnp.int32(_PRIME2))) & jnp.int32(T - 1)                     # (L, Bp, 8)

    vmin = lb_f * step[:, None, :] + off
    vmax = (lb_f + 1.0) * step[:, None, :] + off
    w = (pts[None, :, :] - vmin) / (vmax - vmin)                                       # (L, Bp, 3)
    pif = pi.astype(jnp.float32)[None, None, :, :]                                     # (1, 1, 8, 3)
    wc = jnp.prod(pif * w[:, :, None, :] + (1.0 - pif) * (1.0 - w[:, :, None, :]),
                  axis=-1)                                                             # (L, Bp, 8)

    # --- compact gather of only the touched packed rows, corner-major ------------------------
    # packed plane: entry h, feature f lives at flat row h>>6, lane 2*(h&63)+f.  The reshape of
    # the contiguous (L, T, 2) parameter is a row-major bitcast (no HBM copy); the gather itself
    # only reads the <= L*Bp*8 touched 512-B rows instead of the whole table.
    plane2d = emb_table.astype(jnp.float32).reshape(L * R, 128)
    h_t = jnp.transpose(h, (0, 2, 1))                                                  # (L, 8, Bp)
    grow = jnp.arange(L, dtype=jnp.int32)[:, None, None] * R + (h_t >> 6)              # (L, 8, Bp)
    gathered = jnp.take(plane2d, grow.reshape(-1), axis=0).reshape(L, 8, Bp, 128)

    # per-corner lane-mask * trilinear weight rows (nonzero only on the corner's lane pair).
    lane_half = (jnp.arange(128, dtype=jnp.int32) >> 1)[None, None, None, :]
    cols_t = (h_t & 63)[..., None]                                                     # (L,8,Bp,1)
    wts_t = jnp.transpose(wc, (0, 2, 1))[..., None]                                    # (L,8,Bp,1)
    maskw = jnp.where(lane_half == cols_t, wts_t, 0.0).astype(jnp.float32)             # (L,8,Bp,128)

    out = pl.pallas_call(
        _hashenc_kernel,
        out_shape=jax.ShapeDtypeStruct((L, Bp, 128), jnp.float32),
        grid=(L, n_pt),
        in_specs=[
            pl.BlockSpec((None, 8, PT, 128), lambda l, p: (l, 0, p, 0)),   # gathered rows
            pl.BlockSpec((None, 8, PT, 128), lambda l, p: (l, 0, p, 0)),   # mask * weight rows
        ],
        out_specs=pl.BlockSpec((None, PT, 128), lambda l, p: (l, p, 0)),   # lane-dense output
        compiler_params=pltpu.CompilerParams(
            dimension_semantics=("parallel", "parallel"),   # levels & point tiles independent
        ),
    )(gathered, maskw)

    # lane 2k holds feature-0 contributions of packed column k, lane 2k+1 feature-1: summing
    # lane pairs yields the interpolated (f0, f1) per (level, point).  Then (L,B,2) -> (B, 2L)
    # matching torch.cat(emb_all, dim=-1).
    feats = out.reshape(L, Bp, 64, 2).sum(axis=2)[:, :B]                               # (L, B, 2)
    return feats.transpose(1, 0, 2).reshape(B, L * n_features_per_level)


def hash_encoding_reference(points, bounding_box, emb_table, *, n_levels=16,
                            log2_hashmap_size=19, base_resolution=16, finest_resolution=512):
    """Pure-JAX reference mirroring the torch module."""
    L = n_levels
    growth = jnp.exp((jnp.log(jnp.float32(finest_resolution)) -
                      jnp.log(jnp.float32(base_resolution))) / (n_levels - 1))
    res = jnp.floor(jnp.float32(base_resolution) * growth ** jnp.arange(L, dtype=jnp.float32))
    pi = jnp.array([[0, 0, 0], [0, 0, 1], [0, 1, 0], [0, 1, 1],
                    [1, 0, 0], [1, 0, 1], [1, 1, 0], [1, 1, 1]], jnp.int32)
    primes = jnp.array([1, _PRIME1, _PRIME2], dtype=jnp.int32)
    mask = jnp.int32((1 << log2_hashmap_size) - 1)
    outs = []
    for i in range(L):
        step = (bounding_box[1] - bounding_box[0]) / res[i]
        lb = jnp.floor((points - bounding_box[0]) / step).astype(jnp.int32)
        pind = pi[None, :, :] + lb[:, None, :]                                  # (B, 8, 3)
        h = (pind[..., 0] * primes[0]) ^ (pind[..., 1] * primes[1]) ^ (pind[..., 2] * primes[2])
        h = h & mask                                                            # (B, 8)
        emb = emb_table[i][h]                                                   # (B, 8, 2)
        vmin = lb * step + bounding_box[0]
        vmax = (lb + 1) * step + bounding_box[0]
        w = (points - vmin) / (vmax - vmin)
        c00 = emb[:, 0] * (1 - w[:, 0:1]) + emb[:, 4] * w[:, 0:1]
        c01 = emb[:, 1] * (1 - w[:, 0:1]) + emb[:, 5] * w[:, 0:1]
        c10 = emb[:, 2] * (1 - w[:, 0:1]) + emb[:, 6] * w[:, 0:1]
        c11 = emb[:, 3] * (1 - w[:, 0:1]) + emb[:, 7] * w[:, 0:1]
        c0 = c00 * (1 - w[:, 1:2]) + c10 * w[:, 1:2]
        c1 = c01 * (1 - w[:, 1:2]) + c11 * w[:, 1:2]
        outs.append(c0 * (1 - w[:, 2:3]) + c1 * w[:, 2:3])
    return jnp.concatenate(outs, axis=-1)


if __name__ == "__main__":
    L, F, LOG2T = 16, 2, 19
    T = 1 << LOG2T
    B = 64

    key = jax.random.PRNGKey(0)
    k_emb, k_pts = jax.random.split(key)
    bounding_box = jnp.array([[-1.0, -1.0, -1.0], [1.0, 1.0, 1.0]], jnp.float32)
    # deterministic synthetic "nn.Embedding" weights, instant-ngp style init U(-1e-4, 1e-4)
    emb_table = jax.random.uniform(k_emb, (L, T, F), jnp.float32, minval=-1e-4, maxval=1e-4)
    points = jax.random.uniform(k_pts, (B, 3), jnp.float32, minval=-0.95, maxval=0.95)

    out = hash_encoding_forward(points, bounding_box, emb_table,
                                n_levels=L, n_features_per_level=F,
                                log2_hashmap_size=LOG2T,
                                base_resolution=16, finest_resolution=512)
    out = jax.block_until_ready(out)
    assert out.shape == (B, L * F)

    ref = hash_encoding_reference(points, bounding_box, emb_table,
                                  n_levels=L, log2_hashmap_size=LOG2T,
                                  base_resolution=16, finest_resolution=512)
    np.testing.assert_allclose(np.asarray(out), np.asarray(ref), rtol=5e-3, atol=1e-6)
    print("KERNEL_OK")
</pallas_src>

<mosaic_0001>
module attributes {stable_mosaic.version = 11 : i64} {
  func.func @_hashenc_kernel(%arg0: i32, %arg1: i32, %arg2: memref<1x8x64x128xf32, #tpu.memory_space<vmem>>, %arg3: memref<1x8x64x128xf32, #tpu.memory_space<vmem>>, %arg4: memref<1x64x128xf32, #tpu.memory_space<vmem>>) attributes {dimension_semantics = [#tpu.dimension_semantics<parallel>, #tpu.dimension_semantics<parallel>], iteration_bounds = array<i64: 16, 1>, scalar_prefetch = 0 : i64, scratch_operands = 0 : i64, tpu.core_type = #tpu.core_type<tc>, window_params = [{transform_indices = @transform_0, window_bounds = array<i64: 1, 8, 64, 128>}, {transform_indices = @transform_1, window_bounds = array<i64: 1, 8, 64, 128>}, {transform_indices = @transform_2, window_bounds = array<i64: 1, 64, 128>}]} {
    %c0 = arith.constant 0 : index
    %c0_0 = arith.constant 0 : index
    %c0_1 = arith.constant 0 : index
    %c0_2 = arith.constant 0 : index
    %0 = vector.load %arg2[%c0, %c0_0, %c0_1, %c0_2] : memref<1x8x64x128xf32, #tpu.memory_space<vmem>>, vector<1x1x64x128xf32>
    %1 = vector.shape_cast %0 : vector<1x1x64x128xf32> to vector<64x128xf32>
    %c0_3 = arith.constant 0 : index
    %c0_4 = arith.constant 0 : index
    %c0_5 = arith.constant 0 : index
    %c0_6 = arith.constant 0 : index
    %2 = vector.load %arg3[%c0_3, %c0_4, %c0_5, %c0_6] : memref<1x8x64x128xf32, #tpu.memory_space<vmem>>, vector<1x1x64x128xf32>
    %3 = vector.shape_cast %2 : vector<1x1x64x128xf32> to vector<64x128xf32>
    %4 = arith.mulf %1, %3 : vector<64x128xf32>
    %c0_7 = arith.constant 0 : index
    %c1 = arith.constant 1 : index
    %c0_8 = arith.constant 0 : index
    %c0_9 = arith.constant 0 : index
    %5 = vector.load %arg2[%c0_7, %c1, %c0_8, %c0_9] : memref<1x8x64x128xf32, #tpu.memory_space<vmem>>, vector<1x1x64x128xf32>
    %6 = vector.shape_cast %5 : vector<1x1x64x128xf32> to vector<64x128xf32>
    %c0_10 = arith.constant 0 : index
    %c1_11 = arith.constant 1 : index
    %c0_12 = arith.constant 0 : index
    %c0_13 = arith.constant 0 : index
    %7 = vector.load %arg3[%c0_10, %c1_11, %c0_12, %c0_13] : memref<1x8x64x128xf32, #tpu.memory_space<vmem>>, vector<1x1x64x128xf32>
    %8 = vector.shape_cast %7 : vector<1x1x64x128xf32> to vector<64x128xf32>
    %9 = arith.mulf %6, %8 : vector<64x128xf32>
    %10 = arith.addf %4, %9 : vector<64x128xf32>
    %c0_14 = arith.constant 0 : index
    %c2 = arith.constant 2 : index
    %c0_15 = arith.constant 0 : index
    %c0_16 = arith.constant 0 : index
    %11 = vector.load %arg2[%c0_14, %c2, %c0_15, %c0_16] : memref<1x8x64x128xf32, #tpu.memory_space<vmem>>, vector<1x1x64x128xf32>
    %12 = vector.shape_cast %11 : vector<1x1x64x128xf32> to vector<64x128xf32>
    %c0_17 = arith.constant 0 : index
    %c2_18 = arith.constant 2 : index
    %c0_19 = arith.constant 0 : index
    %c0_20 = arith.constant 0 : index
    %13 = vector.load %arg3[%c0_17, %c2_18, %c0_19, %c0_20] : memref<1x8x64x128xf32, #tpu.memory_space<vmem>>, vector<1x1x64x128xf32>
    %14 = vector.shape_cast %13 : vector<1x1x64x128xf32> to vector<64x128xf32>
    %15 = arith.mulf %12, %14 : vector<64x128xf32>
    %16 = arith.addf %10, %15 : vector<64x128xf32>
    %c0_21 = arith.constant 0 : index
    %c3 = arith.constant 3 : index
    %c0_22 = arith.constant 0 : index
    %c0_23 = arith.constant 0 : index
    %17 = vector.load %arg2[%c0_21, %c3, %c0_22, %c0_23] : memref<1x8x64x128xf32, #tpu.memory_space<vmem>>, vector<1x1x64x128xf32>
    %18 = vector.shape_cast %17 : vector<1x1x64x128xf32> to vector<64x128xf32>
    %c0_24 = arith.constant 0 : index
    %c3_25 = arith.constant 3 : index
    %c0_26 = arith.constant 0 : index
    %c0_27 = arith.constant 0 : index
    %19 = vector.load %arg3[%c0_24, %c3_25, %c0_26, %c0_27] : memref<1x8x64x128xf32, #tpu.memory_space<vmem>>, vector<1x1x64x128xf32>
    %20 = vector.shape_cast %19 : vector<1x1x64x128xf32> to vector<64x128xf32>
    %21 = arith.mulf %18, %20 : vector<64x128xf32>
    %22 = arith.addf %16, %21 : vector<64x128xf32>
    %c0_28 = arith.constant 0 : index
    %c4 = arith.constant 4 : index
    %c0_29 = arith.constant 0 : index
    %c0_30 = arith.constant 0 : index
    %23 = vector.load %arg2[%c0_28, %c4, %c0_29, %c0_30] : memref<1x8x64x128xf32, #tpu.memory_space<vmem>>, vector<1x1x64x128xf32>
    %24 = vector.shape_cast %23 : vector<1x1x64x128xf32> to vector<64x128xf32>
    %c0_31 = arith.constant 0 : index
    %c4_32 = arith.constant 4 : index
    %c0_33 = arith.constant 0 : index
    %c0_34 = arith.constant 0 : index
    %25 = vector.load %arg3[%c0_31, %c4_32, %c0_33, %c0_34] : memref<1x8x64x128xf32, #tpu.memory_space<vmem>>, vector<1x1x64x128xf32>
    %26 = vector.shape_cast %25 : vector<1x1x64x128xf32> to vector<64x128xf32>
    %27 = arith.mulf %24, %26 : vector<64x128xf32>
    %28 = arith.addf %22, %27 : vector<64x128xf32>
    %c0_35 = arith.constant 0 : index
    %c5 = arith.constant 5 : index
    %c0_36 = arith.constant 0 : index
    %c0_37 = arith.constant 0 : index
    %29 = vector.load %arg2[%c0_35, %c5, %c0_36, %c0_37] : memref<1x8x64x128xf32, #tpu.memory_space<vmem>>, vector<1x1x64x128xf32>
    %30 = vector.shape_cast %29 : vector<1x1x64x128xf32> to vector<64x128xf32>
    %c0_38 = arith.constant 0 : index
    %c5_39 = arith.constant 5 : index
    %c0_40 = arith.constant 0 : index
    %c0_41 = arith.constant 0 : index
    %31 = vector.load %arg3[%c0_38, %c5_39, %c0_40, %c0_41] : memref<1x8x64x128xf32, #tpu.memory_space<vmem>>, vector<1x1x64x128xf32>
    %32 = vector.shape_cast %31 : vector<1x1x64x128xf32> to vector<64x128xf32>
    %33 = arith.mulf %30, %32 : vector<64x128xf32>
    %34 = arith.addf %28, %33 : vector<64x128xf32>
    %c0_42 = arith.constant 0 : index
    %c6 = arith.constant 6 : index
    %c0_43 = arith.constant 0 : index
    %c0_44 = arith.constant 0 : index
    %35 = vector.load %arg2[%c0_42, %c6, %c0_43, %c0_44] : memref<1x8x64x128xf32, #tpu.memory_space<vmem>>, vector<1x1x64x128xf32>
    %36 = vector.shape_cast %35 : vector<1x1x64x128xf32> to vector<64x128xf32>
    %c0_45 = arith.constant 0 : index
    %c6_46 = arith.constant 6 : index
    %c0_47 = arith.constant 0 : index
    %c0_48 = arith.constant 0 : index
    %37 = vector.load %arg3[%c0_45, %c6_46, %c0_47, %c0_48] : memref<1x8x64x128xf32, #tpu.memory_space<vmem>>, vector<1x1x64x128xf32>
    %38 = vector.shape_cast %37 : vector<1x1x64x128xf32> to vector<64x128xf32>
    %39 = arith.mulf %36, %38 : vector<64x128xf32>
    %40 = arith.addf %34, %39 : vector<64x128xf32>
    %c0_49 = arith.constant 0 : index
    %c7 = arith.constant 7 : index
    %c0_50 = arith.constant 0 : index
    %c0_51 = arith.constant 0 : index
    %41 = vector.load %arg2[%c0_49, %c7, %c0_50, %c0_51] : memref<1x8x64x128xf32, #tpu.memory_space<vmem>>, vector<1x1x64x128xf32>
    %42 = vector.shape_cast %41 : vector<1x1x64x128xf32> to vector<64x128xf32>
    %c0_52 = arith.constant 0 : index
    %c7_53 = arith.constant 7 : index
    %c0_54 = arith.constant 0 : index
    %c0_55 = arith.constant 0 : index
    %43 = vector.load %arg3[%c0_52, %c7_53, %c0_54, %c0_55] : memref<1x8x64x128xf32, #tpu.memory_space<vmem>>, vector<1x1x64x128xf32>
    %44 = vector.shape_cast %43 : vector<1x1x64x128xf32> to vector<64x128xf32>
    %45 = arith.mulf %42, %44 : vector<64x128xf32>
    %46 = arith.addf %40, %45 : vector<64x128xf32>
    %c0_56 = arith.constant 0 : index
    %c0_57 = arith.constant 0 : index
    %c0_58 = arith.constant 0 : index
    %47 = vector.load %arg4[%c0_56, %c0_57, %c0_58] : memref<1x64x128xf32, #tpu.memory_space<vmem>>, vector<1x64x128xf32>
    %48 = vector.shape_cast %47 : vector<1x64x128xf32> to vector<64x128xf32>
    %49 = vector.shape_cast %46 : vector<64x128xf32> to vector<1x64x128xf32>
    tpu.vector_store %arg4[%c0_56, %c0_57, %c0_58], %49 {strides = array<i32>} : memref<1x64x128xf32, #tpu.memory_space<vmem>>, vector<1x64x128xf32>,
    return
  }
  func.func @transform_0(%arg0: i32, %arg1: i32) -> (i32, i32, i32, i32) {
    %c0_i32 = arith.constant 0 : i32
    %c0_i32_0 = arith.constant 0 : i32
    %c0_i32_1 = arith.constant 0 : i32
    return %arg0, %c0_i32, %arg1, %c0_i32_0 : i32, i32, i32, i32
  }
  func.func @transform_1(%arg0: i32, %arg1: i32) -> (i32, i32, i32, i32) {
    %c0_i32 = arith.constant 0 : i32
    %c0_i32_0 = arith.constant 0 : i32
    %c0_i32_1 = arith.constant 0 : i32
    return %arg0, %c0_i32, %arg1, %c0_i32_0 : i32, i32, i32, i32
  }
  func.func @transform_2(%arg0: i32, %arg1: i32) -> (i32, i32, i32) {
    %c0_i32 = arith.constant 0 : i32
    %c0_i32_0 = arith.constant 0 : i32
    return %arg0, %arg1, %c0_i32 : i32, i32, i32
  }
}

</mosaic_0001>

<llo_original>
// kernel: hash_encoding_forward.1
$region0: #{hash_encoding_forward.1}
  #allocation0 [shape = 'u32[]', space=smem, size = 0x4, offset = 0x4, fixed_abs, tag = 'smem constant byte address 0x4 - core index']
  #allocation1 [shape = 'u32[144,128]{1,0:T(1,128)}', space=vmem, size = 0x12000, scoped, tag = 'internal scratch']
  %s0 = inlined_call_operand.vmem [shape: f32[16,8,64,128], index: 0, kind: input, shape index: {}]
  %s1 = inlined_call_operand.vmem [shape: f32[16,8,64,128], index: 1, kind: input, shape index: {}]
  %s2 = inlined_call_operand.vmem [shape: f32[16,64,128], index: 2, kind: output, shape index: {}]
  %s3 = sld [smem:[#allocation0]]
  $region41: #{hash_encoding_forward.1} parent=0
    _
  %s5 = ssub.s32 1, %s3
  %s6 = scalar_select 0, %s5, %s3
  loop: start=0, step=1, limit=18
  $region2: #{hash_encoding_forward.1} parent=0 // loop_pre_header
    _
  $region3: #{hash_encoding_forward.1} parent=0 // loop_header
    %s8 = sphi 0, %s12
    %p9 = scmp.ge.s32.totalorder %s8, 18
    %s15 = sphi 0, %s27
    %s16 = sphi 0, %s23
    %s17 = sphi 0, %s15
    %s18 = sphi 0, %s16
    %s19 = sphi 0, %s17
    %s20 = sphi 0, %s18
    %s32 = sphi 0, %s34
    %s35 = sphi 0, %s32
    %s36 = sphi 0, %s35
    %s52 = sphi 0, %s36
    %s60 = sphi 0, %s62
    %s63 = sphi 0, %s60
    %s64 = sphi 0, %s63
    %s80 = sphi 0, %s64
    %s88 = sphi 0, %s90
    %s91 = sphi 0, %s88
    %s92 = sphi 0, %s91
    %s108 = sphi 0, %s92
  $region4: #{hash_encoding_forward.1} parent=0 // loop_header_branch
    %11 = sbr.rel (%p9) target = $region8
  $region5: #{hash_encoding_forward.1} parent=0 // loop_body
    %s13 = ssub.s32 %s8, 1
    %s14 = ssub.s32 %s8, 2
    %s21 = sadd.s32 1, %s16
    %p22 = scmp.ge.s32.totalorder %s21, 1
    %s23 = scalar_select %p22, 0, %s21
    %s24 = sadd.s32 1, %s15
    %s25 = scalar_select %p22, %s24, %s15
    %p26 = scmp.ge.s32.totalorder %s25, 16
    %s27 = scalar_select %p26, 0, %s25
    %s28 = ssub.s32 %s15, %s27
    %s29 = ssub.s32 %s16, %s23
    %s30 = sor.u32 %s28, %s29
    %p31 = scmp.eq.s32.totalorder %s30, 0
    %s33 = sadd.s32 %s32, 1
    %s34 = scalar_select %p31, %s32, %s33
    %p37 = pneg %p31
    %p38 = scmp.eq.s32.totalorder %s8, 15
    %p39 = por %p37, %p38
    %p40 = scmp.ne.s32.totalorder %s32, %s35
    %p41 = scmp.eq.s32.totalorder %s8, 0
    %p42 = por %p40, %p41
    %p43 = scmp.ne.s32.totalorder %s32, %s35
    %p44 = scmp.eq.s32.totalorder %s13, 15
    %p45 = por %p43, %p44
    %p46 = scmp.ne.s32.totalorder %s35, %s36
    %p47 = scmp.eq.s32.totalorder %s13, 0
    %p48 = por %p46, %p47
    %p49 = scmp.ne.s32.totalorder %s35, %s36
    %p50 = scmp.eq.s32.totalorder %s14, 15
    %p51 = por %p49, %p50
    %p53 = scmp.ne.s32.totalorder %s36, %s52
    %p54 = scmp.eq.s32.totalorder %s14, 0
    %p55 = por %p53, %p54
    %s56 = ssub.s32 %s15, %s27
    %s57 = ssub.s32 %s16, %s23
    %s58 = sor.u32 %s56, %s57
    %p59 = scmp.eq.s32.totalorder %s58, 0
    %s61 = sadd.s32 %s60, 1
    %s62 = scalar_select %p59, %s60, %s61
    %p65 = pneg %p59
    %p66 = scmp.eq.s32.totalorder %s8, 15
    %p67 = por %p65, %p66
    %p68 = scmp.ne.s32.totalorder %s60, %s63
    %p69 = scmp.eq.s32.totalorder %s8, 0
    %p70 = por %p68, %p69
    %p71 = scmp.ne.s32.totalorder %s60, %s63
    %p72 = scmp.eq.s32.totalorder %s13, 15
    %p73 = por %p71, %p72
    %p74 = scmp.ne.s32.totalorder %s63, %s64
    %p75 = scmp.eq.s32.totalorder %s13, 0
    %p76 = por %p74, %p75
    %p77 = scmp.ne.s32.totalorder %s63, %s64
    %p78 = scmp.eq.s32.totalorder %s14, 15
    %p79 = por %p77, %p78
    %p81 = scmp.ne.s32.totalorder %s64, %s80
    %p82 = scmp.eq.s32.totalorder %s14, 0
    %p83 = por %p81, %p82
    %s84 = ssub.s32 %s15, %s27
    %s85 = ssub.s32 %s16, %s23
    %s86 = sor.u32 %s84, %s85
    %p87 = scmp.eq.s32.totalorder %s86, 0
    %s89 = sadd.s32 %s88, 1
    %s90 = scalar_select %p87, %s88, %s89
    %p93 = pneg %p87
    %p94 = scmp.eq.s32.totalorder %s8, 15
    %p95 = por %p93, %p94
    %p96 = scmp.ne.s32.totalorder %s88, %s91
    %p97 = scmp.eq.s32.totalorder %s8, 0
    %p98 = por %p96, %p97
    %p99 = scmp.ne.s32.totalorder %s88, %s91
    %p100 = scmp.eq.s32.totalorder %s13, 15
    %p101 = por %p99, %p100
    %p102 = scmp.ne.s32.totalorder %s91, %s92
    %p103 = scmp.eq.s32.totalorder %s13, 0
    %p104 = por %p102, %p103
    %p105 = scmp.ne.s32.totalorder %s91, %s92
    %p106 = scmp.eq.s32.totalorder %s14, 15
    %p107 = por %p105, %p106
    %p109 = scmp.ne.s32.totalorder %s92, %s108
    %p110 = scmp.eq.s32.totalorder %s14, 0
    %p111 = por %p109, %p110
    %p112 = scmp.le.s32.totalorder 1, %s8
    %p113 = scmp.lt.s32.totalorder %s8, 17
    %p114 = pnand %p112, %p113
    %p115 = pneg %p114
    // Predicated region
    $region9: #{hash_encoding_forward.1} parent=5 // pred_check
      _
    $region10: #{hash_encoding_forward.1} parent=5 // pred_check_branch
      %117 = sbr.rel (%p114) target = $region12
    $region11: #{hash_encoding_forward.1} parent=5 // pred_region
      %s118 = ssub.s32 %s8, 1
    $region12: #{hash_encoding_forward.1} parent=5 // pred_fallthru
      _
    %p119 = scmp.lt.s32.totalorder %s8, 16
    // Predicated region
    $region13: #{hash_encoding_forward.1} parent=5 // pred_check
      %p120 = pneg %p119
    $region14: #{hash_encoding_forward.1} parent=5 // pred_check_branch
      %122 = sbr.rel (%p120) target = $region16
    $region15: #{hash_encoding_forward.1} parent=5 // pred_region
      // Predicated region
      $region17: #{hash_encoding_forward.1} parent=15 // pred_check
        %p123 = pneg %p42
      $region18: #{hash_encoding_forward.1} parent=15 // pred_check_branch
        %125 = sbr.rel (%p123) target = $region20
      $region19: #{hash_encoding_forward.1} parent=15 // pred_region
        %s126 = smul.u32 8, %s16
        %p127 = scmp.lt.s32.totalorder %s15, 15
        %s128 = scalar_select %p127, %s15, 15
        %p129 = scmp.lt.s32.totalorder %s126, 7
        %s130 = scalar_select %p129, %s126, 7
        %s131 = smul.addr %s128, 64
        %s132 = sadd.s32 %s130, %s131
        %s133 = smul.addr %s132, 8
        %s134 = scalar_lea.vmem %s0, %s133
        %s135 = smul.u32 8, %s16
      $region20: #{hash_encoding_forward.1} parent=15 // pred_fallthru
        _
      // Predicated region
      $region21: #{hash_encoding_forward.1} parent=15 // pred_check
        %p136 = pneg %p70
      $region22: #{hash_encoding_forward.1} parent=15 // pred_check_branch
        %138 = sbr.rel (%p136) target = $region24
      $region23: #{hash_encoding_forward.1} parent=15 // pred_region
        %s139 = smul.u32 8, %s16
        %p140 = scmp.lt.s32.totalorder %s15, 15
        %s141 = scalar_select %p140, %s15, 15
        %p142 = scmp.lt.s32.totalorder %s139, 7
        %s143 = scalar_select %p142, %s139, 7
        %s144 = smul.addr %s141, 64
        %s145 = sadd.s32 %s143, %s144
        %s146 = smul.addr %s145, 8
        %s147 = scalar_lea.vmem %s1, %s146
        %s148 = smul.u32 8, %s16
      $region24: #{hash_encoding_forward.1} parent=15 // pred_fallthru
        _
    $region16: #{hash_encoding_forward.1} parent=5 // pred_fallthru
      _
    %p149 = scmp.le.s32.totalorder 1, %s8
    %p150 = scmp.lt.s32.totalorder %s8, 17
    %p151 = pnand %p149, %p150
    %p152 = pneg %p151
    // Predicated region
    $region25: #{hash_encoding_forward.1} parent=5 // pred_check
      _
    $region26: #{hash_encoding_forward.1} parent=5 // pred_check_branch
      %154 = sbr.rel (%p151) target = $region28
    $region27: #{hash_encoding_forward.1} parent=5 // pred_region
      %s155 = ssub.s32 %s8, 1
      %s156 = smul.u32 8, %s18
      %p157 = scmp.lt.s32.totalorder %s17, 15
      %s158 = scalar_select %p157, %s17, 15
      %p159 = scmp.lt.s32.totalorder %s156, 7
      %s160 = scalar_select %p159, %s156, 7
      %s161 = smul.addr %s158, 64
      %s162 = sadd.s32 %s160, %s161
      %s163 = smul.addr %s162, 8
      %s164 = scalar_lea.vmem %s0, %s163
      %p165 = pneg %p48
      %p166 = pneg %p45
      %s167 = smul.u32 8, %s18
      %p168 = scmp.lt.s32.totalorder %s17, 15
      %s169 = scalar_select %p168, %s17, 15
      %p170 = scmp.lt.s32.totalorder %s167, 7
      %s171 = scalar_select %p170, %s167, 7
      %s172 = smul.addr %s169, 64
      %s173 = sadd.s32 %s171, %s172
      %s174 = smul.addr %s173, 8
      %s175 = scalar_lea.vmem %s1, %s174
      %p176 = pneg %p76
      %p177 = pneg %p73
      %p178 = pneg %p104
      %p179 = pneg %p101
      %s180 = smul.u32 8, %s18
      %p181 = scmp.lt.s32.totalorder %s17, 15
      %s182 = scalar_select %p181, %s17, 15
      %p183 = scmp.lt.s32.totalorder %s180, 7
      %s184 = scalar_select %p183, %s180, 7
      %s185 = smul.addr %s182, 8
      %s186 = sadd.s32 %s184, %s185
      %s187 = smul.addr %s186, 8
      %s188 = scalar_lea.vmem %s2, %s187
      %s189 = smul.u32 8, %s18
      %p190 = scmp.lt.s32.totalorder %s17, 15
      %s191 = scalar_select %p190, %s17, 15
      %p192 = scmp.lt.s32.totalorder %s189, 7
      %s193 = scalar_select %p192, %s189, 7
      %s194 = smul.addr %s191, 64
      %s195 = sadd.s32 %s193, %s194
      %s196 = smul.addr %s195, 8
      %s197 = scalar_lea.vmem %s0, %s196
      %s198 = smul.u32 8, %s18
      %s199 = smul.u32 8, %s18
      %p200 = scmp.lt.s32.totalorder %s17, 15
      %s201 = scalar_select %p200, %s17, 15
      %p202 = scmp.lt.s32.totalorder %s199, 7
      %s203 = scalar_select %p202, %s199, 7
      %s204 = smul.addr %s201, 64
      %s205 = sadd.s32 %s203, %s204
      %s206 = smul.addr %s205, 8
      %s207 = scalar_lea.vmem %s1, %s206
      %s208 = smul.u32 8, %s18
      %s209 = smul.u32 8, %s18
      %p210 = scmp.lt.s32.totalorder %s17, 15
      %s211 = scalar_select %p210, %s17, 15
      %p212 = scmp.lt.s32.totalorder %s209, 7
      %s213 = scalar_select %p212, %s209, 7
      %s214 = smul.addr %s211, 8
      %s215 = sadd.s32 %s213, %s214
      %s216 = smul.addr %s215, 8
      %s217 = scalar_lea.vmem %s2, %s216
      %s218 = smul.u32 8, %s18
      %v219 = vld [vmem:[%s197] sm:$0xff]
      %v220 = vld [vmem:[%s197 + $0x8] sm:$0xff]
      %v221 = vld [vmem:[%s197 + $0x10] sm:$0xff]
      %v222 = vld [vmem:[%s197 + $0x18] sm:$0xff]
      %v223 = vld [vmem:[%s197 + $0x20] sm:$0xff]
      %v224 = vld [vmem:[%s197 + $0x28] sm:$0xff]
      %v225 = vld [vmem:[%s197 + $0x30] sm:$0xff]
      %v226 = vld [vmem:[%s197 + $0x38] sm:$0xff]
      %v227 = vld [vmem:[%s207] sm:$0xff]
      %v228 = vld [vmem:[%s207 + $0x8] sm:$0xff]
      %v229 = vld [vmem:[%s207 + $0x10] sm:$0xff]
      %v230 = vld [vmem:[%s207 + $0x18] sm:$0xff]
      %v231 = vld [vmem:[%s207 + $0x20] sm:$0xff]
      %v232 = vld [vmem:[%s207 + $0x28] sm:$0xff]
      %v233 = vld [vmem:[%s207 + $0x30] sm:$0xff]
      %v234 = vld [vmem:[%s207 + $0x38] sm:$0xff]
      %v235 = vmul.f32 %v219, %v227
      %v236 = vmul.f32 %v220, %v228
      %v237 = vmul.f32 %v221, %v229
      %v238 = vmul.f32 %v222, %v230
      %v239 = vmul.f32 %v223, %v231
      %v240 = vmul.f32 %v224, %v232
      %v241 = vmul.f32 %v225, %v233
      %v242 = vmul.f32 %v226, %v234
      %s243 = scalar_lea.vmem %s197, 64
      %v244 = vld [vmem:[%s243] sm:$0xff]
      %v245 = vld [vmem:[%s243 + $0x8] sm:$0xff]
      %v246 = vld [vmem:[%s243 + $0x10] sm:$0xff]
      %v247 = vld [vmem:[%s243 + $0x18] sm:$0xff]
      %v248 = vld [vmem:[%s243 + $0x20] sm:$0xff]
      %v249 = vld [vmem:[%s243 + $0x28] sm:$0xff]
      %v250 = vld [vmem:[%s243 + $0x30] sm:$0xff]
      %v251 = vld [vmem:[%s243 + $0x38] sm:$0xff]
      %s252 = scalar_lea.vmem %s207, 64
      %v253 = vld [vmem:[%s252] sm:$0xff]
      %v254 = vld [vmem:[%s252 + $0x8] sm:$0xff]
      %v255 = vld [vmem:[%s252 + $0x10] sm:$0xff]
      %v256 = vld [vmem:[%s252 + $0x18] sm:$0xff]
      %v257 = vld [vmem:[%s252 + $0x20] sm:$0xff]
      %v258 = vld [vmem:[%s252 + $0x28] sm:$0xff]
      %v259 = vld [vmem:[%s252 + $0x30] sm:$0xff]
      %v260 = vld [vmem:[%s252 + $0x38] sm:$0xff]
      %v261 = vmul.f32 %v244, %v253
      %v262 = vmul.f32 %v245, %v254
      %v263 = vmul.f32 %v246, %v255
      %v264 = vmul.f32 %v247, %v256
      %v265 = vmul.f32 %v248, %v257
      %v266 = vmul.f32 %v249, %v258
      %v267 = vmul.f32 %v250, %v259
      %v268 = vmul.f32 %v251, %v260
      %v269 = vadd.f32 %v235, %v261
      %v270 = vadd.f32 %v236, %v262
      %v271 = vadd.f32 %v237, %v263
      %v272 = vadd.f32 %v238, %v264
      %v273 = vadd.f32 %v239, %v265
      %v274 = vadd.f32 %v240, %v266
      %v275 = vadd.f32 %v241, %v267
      %v276 = vadd.f32 %v242, %v268
      %s277 = scalar_lea.vmem %s197, 128
      %v278 = vld [vmem:[%s277] sm:$0xff]
      %v279 = vld [vmem:[%s277 + $0x8] sm:$0xff]
      %v280 = vld [vmem:[%s277 + $0x10] sm:$0xff]
      %v281 = vld [vmem:[%s277 + $0x18] sm:$0xff]
      %v282 = vld [vmem:[%s277 + $0x20] sm:$0xff]
      %v283 = vld [vmem:[%s277 + $0x28] sm:$0xff]
      %v284 = vld [vmem:[%s277 + $0x30] sm:$0xff]
      %v285 = vld [vmem:[%s277 + $0x38] sm:$0xff]
      %s286 = scalar_lea.vmem %s207, 128
      %v287 = vld [vmem:[%s286] sm:$0xff]
      %v288 = vld [vmem:[%s286 + $0x8] sm:$0xff]
      %v289 = vld [vmem:[%s286 + $0x10] sm:$0xff]
      %v290 = vld [vmem:[%s286 + $0x18] sm:$0xff]
      %v291 = vld [vmem:[%s286 + $0x20] sm:$0xff]
      %v292 = vld [vmem:[%s286 + $0x28] sm:$0xff]
      %v293 = vld [vmem:[%s286 + $0x30] sm:$0xff]
      %v294 = vld [vmem:[%s286 + $0x38] sm:$0xff]
      %v295 = vmul.f32 %v278, %v287
      %v296 = vmul.f32 %v279, %v288
      %v297 = vmul.f32 %v280, %v289
      %v298 = vmul.f32 %v281, %v290
      %v299 = vmul.f32 %v282, %v291
      %v300 = vmul.f32 %v283, %v292
      %v301 = vmul.f32 %v284, %v293
      %v302 = vmul.f32 %v285, %v294
      %v303 = vadd.f32 %v269, %v295
      %v304 = vadd.f32 %v270, %v296
      %v305 = vadd.f32 %v271, %v297
      %v306 = vadd.f32 %v272, %v298
      %v307 = vadd.f32 %v273, %v299
      %v308 = vadd.f32 %v274, %v300
      %v309 = vadd.f32 %v275, %v301
      %v310 = vadd.f32 %v276, %v302
      %s311 = scalar_lea.vmem %s197, 192
      %v312 = vld [vmem:[%s311] sm:$0xff]
      %v313 = vld [vmem:[%s311 + $0x8] sm:$0xff]
      %v314 = vld [vmem:[%s311 + $0x10] sm:$0xff]
      %v315 = vld [vmem:[%s311 + $0x18] sm:$0xff]
      %v316 = vld [vmem:[%s311 + $0x20] sm:$0xff]
      %v317 = vld [vmem:[%s311 + $0x28] sm:$0xff]
      %v318 = vld [vmem:[%s311 + $0x30] sm:$0xff]
      %v319 = vld [vmem:[%s311 + $0x38] sm:$0xff]
      %s320 = scalar_lea.vmem %s207, 192
      %v321 = vld [vmem:[%s320] sm:$0xff]
      %v322 = vld [vmem:[%s320 + $0x8] sm:$0xff]
      %v323 = vld [vmem:[%s320 + $0x10] sm:$0xff]
      %v324 = vld [vmem:[%s320 + $0x18] sm:$0xff]
      %v325 = vld [vmem:[%s320 + $0x20] sm:$0xff]
      %v326 = vld [vmem:[%s320 + $0x28] sm:$0xff]
      %v327 = vld [vmem:[%s320 + $0x30] sm:$0xff]
      %v328 = vld [vmem:[%s320 + $0x38] sm:$0xff]
      %v329 = vmul.f32 %v312, %v321
      %v330 = vmul.f32 %v313, %v322
      %v331 = vmul.f32 %v314, %v323
      %v332 = vmul.f32 %v315, %v324
      %v333 = vmul.f32 %v316, %v325
      %v334 = vmul.f32 %v317, %v326
      %v335 = vmul.f32 %v318, %v327
      %v336 = vmul.f32 %v319, %v328
      %v337 = vadd.f32 %v303, %v329
      %v338 = vadd.f32 %v304, %v330
      %v339 = vadd.f32 %v305, %v331
      %v340 = vadd.f32 %v306, %v332
      %v341 = vadd.f32 %v307, %v333
      %v342 = vadd.f32 %v308, %v334
      %v343 = vadd.f32 %v309, %v335
      %v344 = vadd.f32 %v310, %v336
      %s345 = scalar_lea.vmem %s197, 256
      %v346 = vld [vmem:[%s345] sm:$0xff]
      %v347 = vld [vmem:[%s345 + $0x8] sm:$0xff]
      %v348 = vld [vmem:[%s345 + $0x10] sm:$0xff]
      %v349 = vld [vmem:[%s345 + $0x18] sm:$0xff]
      %v350 = vld [vmem:[%s345 + $0x20] sm:$0xff]
      %v351 = vld [vmem:[%s345 + $0x28] sm:$0xff]
      %v352 = vld [vmem:[%s345 + $0x30] sm:$0xff]
      %v353 = vld [vmem:[%s345 + $0x38] sm:$0xff]
      %s354 = scalar_lea.vmem %s207, 256
      %v355 = vld [vmem:[%s354] sm:$0xff]
      %v356 = vld [vmem:[%s354 + $0x8] sm:$0xff]
      %v357 = vld [vmem:[%s354 + $0x10] sm:$0xff]
      %v358 = vld [vmem:[%s354 + $0x18] sm:$0xff]
      %v359 = vld [vmem:[%s354 + $0x20] sm:$0xff]
      %v360 = vld [vmem:[%s354 + $0x28] sm:$0xff]
      %v361 = vld [vmem:[%s354 + $0x30] sm:$0xff]
      %v362 = vld [vmem:[%s354 + $0x38] sm:$0xff]
      %v363 = vmul.f32 %v346, %v355
      %v364 = vmul.f32 %v347, %v356
      %v365 = vmul.f32 %v348, %v357
      %v366 = vmul.f32 %v349, %v358
      %v367 = vmul.f32 %v350, %v359
      %v368 = vmul.f32 %v351, %v360
      %v369 = vmul.f32 %v352, %v361
      %v370 = vmul.f32 %v353, %v362
      %v371 = vadd.f32 %v337, %v363
      %v372 = vadd.f32 %v338, %v364
      %v373 = vadd.f32 %v339, %v365
      %v374 = vadd.f32 %v340, %v366
      %v375 = vadd.f32 %v341, %v367
      %v376 = vadd.f32 %v342, %v368
      %v377 = vadd.f32 %v343, %v369
      %v378 = vadd.f32 %v344, %v370
      %s379 = scalar_lea.vmem %s197, 320
      %v380 = vld [vmem:[%s379] sm:$0xff]
      %v381 = vld [vmem:[%s379 + $0x8] sm:$0xff]
      %v382 = vld [vmem:[%s379 + $0x10] sm:$0xff]
      %v383 = vld [vmem:[%s379 + $0x18] sm:$0xff]
      %v384 = vld [vmem:[%s379 + $0x20] sm:$0xff]
      %v385 = vld [vmem:[%s379 + $0x28] sm:$0xff]
      %v386 = vld [vmem:[%s379 + $0x30] sm:$0xff]
      %v387 = vld [vmem:[%s379 + $0x38] sm:$0xff]
      %s388 = scalar_lea.vmem %s207, 320
      %v389 = vld [vmem:[%s388] sm:$0xff]
      %v390 = vld [vmem:[%s388 + $0x8] sm:$0xff]
      %v391 = vld [vmem:[%s388 + $0x10] sm:$0xff]
      %v392 = vld [vmem:[%s388 + $0x18] sm:$0xff]
      %v393 = vld [vmem:[%s388 + $0x20] sm:$0xff]
      %v394 = vld [vmem:[%s388 + $0x28] sm:$0xff]
      %v395 = vld [vmem:[%s388 + $0x30] sm:$0xff]
      %v396 = vld [vmem:[%s388 + $0x38] sm:$0xff]
      %v397 = vmul.f32 %v380, %v389
      %v398 = vmul.f32 %v381, %v390
      %v399 = vmul.f32 %v382, %v391
      %v400 = vmul.f32 %v383, %v392
      %v401 = vmul.f32 %v384, %v393
      %v402 = vmul.f32 %v385, %v394
      %v403 = vmul.f32 %v386, %v395
      %v404 = vmul.f32 %v387, %v396
      %v405 = vadd.f32 %v371, %v397
      %v406 = vadd.f32 %v372, %v398
      %v407 = vadd.f32 %v373, %v399
      %v408 = vadd.f32 %v374, %v400
      %v409 = vadd.f32 %v375, %v401
      %v410 = vadd.f32 %v376, %v402
      %v411 = vadd.f32 %v377, %v403
      %v412 = vadd.f32 %v378, %v404
      %s413 = scalar_lea.vmem %s197, 384
      %v414 = vld [vmem:[%s413] sm:$0xff]
      %v415 = vld [vmem:[%s413 + $0x8] sm:$0xff]
      %v416 = vld [vmem:[%s413 + $0x10] sm:$0xff]
      %v417 = vld [vmem:[%s413 + $0x18] sm:$0xff]
      %v418 = vld [vmem:[%s413 + $0x20] sm:$0xff]
      %v419 = vld [vmem:[%s413 + $0x28] sm:$0xff]
      %v420 = vld [vmem:[%s413 + $0x30] sm:$0xff]
      %v421 = vld [vmem:[%s413 + $0x38] sm:$0xff]
      %s422 = scalar_lea.vmem %s207, 384
      %v423 = vld [vmem:[%s422] sm:$0xff]
      %v424 = vld [vmem:[%s422 + $0x8] sm:$0xff]
      %v425 = vld [vmem:[%s422 + $0x10] sm:$0xff]
      %v426 = vld [vmem:[%s422 + $0x18] sm:$0xff]
      %v427 = vld [vmem:[%s422 + $0x20] sm:$0xff]
      %v428 = vld [vmem:[%s422 + $0x28] sm:$0xff]
      %v429 = vld [vmem:[%s422 + $0x30] sm:$0xff]
      %v430 = vld [vmem:[%s422 + $0x38] sm:$0xff]
      %v431 = vmul.f32 %v414, %v423
      %v432 = vmul.f32 %v415, %v424
      %v433 = vmul.f32 %v416, %v425
      %v434 = vmul.f32 %v417, %v426
      %v435 = vmul.f32 %v418, %v427
      %v436 = vmul.f32 %v419, %v428
      %v437 = vmul.f32 %v420, %v429
      %v438 = vmul.f32 %v421, %v430
      %v439 = vadd.f32 %v405, %v431
      %v440 = vadd.f32 %v406, %v432
      %v441 = vadd.f32 %v407, %v433
      %v442 = vadd.f32 %v408, %v434
      %v443 = vadd.f32 %v409, %v435
      %v444 = vadd.f32 %v410, %v436
      %v445 = vadd.f32 %v411, %v437
      %v446 = vadd.f32 %v412, %v438
      %s447 = scalar_lea.vmem %s197, 448
      %v448 = vld [vmem:[%s447] sm:$0xff]
      %v449 = vld [vmem:[%s447 + $0x8] sm:$0xff]
      %v450 = vld [vmem:[%s447 + $0x10] sm:$0xff]
      %v451 = vld [vmem:[%s447 + $0x18] sm:$0xff]
      %v452 = vld [vmem:[%s447 + $0x20] sm:$0xff]
      %v453 = vld [vmem:[%s447 + $0x28] sm:$0xff]
      %v454 = vld [vmem:[%s447 + $0x30] sm:$0xff]
      %v455 = vld [vmem:[%s447 + $0x38] sm:$0xff]
      %s456 = scalar_lea.vmem %s207, 448
      %v457 = vld [vmem:[%s456] sm:$0xff]
      %v458 = vld [vmem:[%s456 + $0x8] sm:$0xff]
      %v459 = vld [vmem:[%s456 + $0x10] sm:$0xff]
      %v460 = vld [vmem:[%s456 + $0x18] sm:$0xff]
      %v461 = vld [vmem:[%s456 + $0x20] sm:$0xff]
      %v462 = vld [vmem:[%s456 + $0x28] sm:$0xff]
      %v463 = vld [vmem:[%s456 + $0x30] sm:$0xff]
      %v464 = vld [vmem:[%s456 + $0x38] sm:$0xff]
      %v465 = vmul.f32 %v448, %v457
      %v466 = vmul.f32 %v449, %v458
      %v467 = vmul.f32 %v450, %v459
      %v468 = vmul.f32 %v451, %v460
      %v469 = vmul.f32 %v452, %v461
      %v470 = vmul.f32 %v453, %v462
      %v471 = vmul.f32 %v454, %v463
      %v472 = vmul.f32 %v455, %v464
      %v473 = vadd.f32 %v439, %v465
      %v474 = vadd.f32 %v440, %v466
      %v475 = vadd.f32 %v441, %v467
      %v476 = vadd.f32 %v442, %v468
      %v477 = vadd.f32 %v443, %v469
      %v478 = vadd.f32 %v444, %v470
      %v479 = vadd.f32 %v445, %v471
      %v480 = vadd.f32 %v446, %v472
      %481 = vst [vmem:[%s217] sm:$0xff] %v473
      %482 = vst [vmem:[%s217 + $0x8] sm:$0xff] %v474
      %483 = vst [vmem:[%s217 + $0x10] sm:$0xff] %v475
      %484 = vst [vmem:[%s217 + $0x18] sm:$0xff] %v476
      %485 = vst [vmem:[%s217 + $0x20] sm:$0xff] %v477
      %486 = vst [vmem:[%s217 + $0x28] sm:$0xff] %v478
      %487 = vst [vmem:[%s217 + $0x30] sm:$0xff] %v479
      %488 = vst [vmem:[%s217 + $0x38] sm:$0xff] %v480
      %s489 = smul.u32 8, %s18
      %p490 = scmp.lt.s32.totalorder %s17, 15
      %s491 = scalar_select %p490, %s17, 15
      %p492 = scmp.lt.s32.totalorder %s489, 7
      %s493 = scalar_select %p492, %s489, 7
      %s494 = smul.addr %s491, 8
      %s495 = sadd.s32 %s493, %s494
      %s496 = smul.addr %s495, 8
      %s497 = scalar_lea.vmem %s2, %s496
      // Predicated region
      $region29: #{hash_encoding_forward.1} parent=27 // pred_check
        %p498 = pneg %p101
      $region30: #{hash_encoding_forward.1} parent=27 // pred_check_branch
        %500 = sbr.rel (%p498) target = $region32
      $region31: #{hash_encoding_forward.1} parent=27 // pred_region
        %s501 = smul.u32 8, %s18
      $region32: #{hash_encoding_forward.1} parent=27 // pred_fallthru
        _
    $region28: #{hash_encoding_forward.1} parent=5 // pred_fallthru
      _
    %p502 = scmp.le.s32.totalorder 2, %s8
    // Predicated region
    $region33: #{hash_encoding_forward.1} parent=5 // pred_check
      %p503 = pneg %p502
    $region34: #{hash_encoding_forward.1} parent=5 // pred_check_branch
      %505 = sbr.rel (%p503) target = $region36
    $region35: #{hash_encoding_forward.1} parent=5 // pred_region
      %s506 = ssub.s32 %s8, 2
      // Predicated region
      $region37: #{hash_encoding_forward.1} parent=35 // pred_check
        %p507 = pneg %p107
      $region38: #{hash_encoding_forward.1} parent=35 // pred_check_branch
        %509 = sbr.rel (%p507) target = $region40
      $region39: #{hash_encoding_forward.1} parent=35 // pred_region
        %s510 = smul.u32 8, %s20
        %p511 = scmp.lt.s32.totalorder %s19, 15
        %s512 = scalar_select %p511, %s19, 15
        %p513 = scmp.lt.s32.totalorder %s510, 7
        %s514 = scalar_select %p513, %s510, 7
        %s515 = smul.addr %s512, 8
        %s516 = sadd.s32 %s514, %s515
        %s517 = smul.addr %s516, 8
        %s518 = scalar_lea.vmem %s2, %s517
      $region40: #{hash_encoding_forward.1} parent=35 // pred_fallthru
        _
    $region36: #{hash_encoding_forward.1} parent=5 // pred_fallthru
      _
  $region6: #{hash_encoding_forward.1} parent=0 // loop_footer
    %s12 = sadd.s32 1, %s8
  $region7: #{hash_encoding_forward.1} parent=0 // loop_footer_branch
    %7 = sbr.rel target = $region3
  $region8: #{hash_encoding_forward.1} parent=0 // loop_exit
    _

</llo_original>
